<compile_context>
chip_gen: v7x
topology: tpu7x:2x2x1
jax: 0.10.0
libtpu: 0.0.40
codegen_flags: <defaults>
</compile_context>

<pallas_src>
import jax
import jax.numpy as jnp
from jax.experimental import pallas as pl
from jax.experimental.pallas import tpu as pltpu


def _readout_fused_kernel(x_ref, w6_ref, b6_ref, w7_ref, b7_ref, w8_ref, b8_ref,
                          o_ref):
    """Single-program fused MLP head: dot->sigmoid->dot->sigmoid->dot.

    Weights arrive as bf16; dots accumulate in f32 on the MXU; bias-add and
    sigmoid stay in f32 on the VPU/EUP.
    """
    x = x_ref[...].astype(jnp.bfloat16)
    h = jnp.dot(x, w6_ref[...], preferred_element_type=jnp.float32)
    h = jax.nn.sigmoid(h + b6_ref[...])
    # dropout6: identity (eval mode)
    h = jnp.dot(h.astype(jnp.bfloat16), w7_ref[...],
                preferred_element_type=jnp.float32)
    h = jax.nn.sigmoid(h + b7_ref[...])
    # dropout7: identity (eval mode)
    y = jnp.dot(h.astype(jnp.bfloat16), w8_ref[...],
                preferred_element_type=jnp.float32)
    o_ref[...] = (y + b8_ref[...]).astype(o_ref.dtype)


def readout_forward(x_nchw, w6, b6, w7, b7, w8, b8):
    """Fused forward pass.

    x_nchw: (B, C, H, W) float32
    w6: (K,  H1) bf16, b6: (1, H1) f32
    w7: (H1, H2) bf16, b7: (1, H2) f32
    w8: (H2, N)  bf16, b8: (1, N)  f32
    Returns (B, N) float32.
    """
    B = x_nchw.shape[0]
    x = x_nchw.reshape(B, -1)                     # row-major (C, H, W) flatten
    M, K = x.shape
    K6, H1 = w6.shape
    H1b, H2 = w7.shape
    H2b, N = w8.shape
    assert K == K6 and H1 == H1b and H2 == H2b
    assert b6.shape == (1, H1) and b7.shape == (1, H2) and b8.shape == (1, N)

    out = pl.pallas_call(
        _readout_fused_kernel,
        out_shape=jax.ShapeDtypeStruct((M, N), jnp.float32),
        grid_spec=pltpu.PrefetchScalarGridSpec(
            num_scalar_prefetch=0,
            grid=(1,),                             # whole forward = one program
            in_specs=[
                pl.BlockSpec((M, K), lambda i: (0, 0)),    # x (full-array block)
                pl.BlockSpec((K, H1), lambda i: (0, 0)),   # w6 (bf16)
                pl.BlockSpec((1, H1), lambda i: (0, 0)),   # b6
                pl.BlockSpec((H1, H2), lambda i: (0, 0)),  # w7 (bf16)
                pl.BlockSpec((1, H2), lambda i: (0, 0)),   # b7
                pl.BlockSpec((H2, N), lambda i: (0, 0)),   # w8 (bf16)
                pl.BlockSpec((1, N), lambda i: (0, 0)),    # b8
            ],
            out_specs=pl.BlockSpec((M, N), lambda i: (0, 0)),
        ),
        compiler_params=pltpu.CompilerParams(
            dimension_semantics=("arbitrary",),
        ),
    )(x, w6, b6, w7, b7, w8, b8)

    return out


class ReadoutPallas:
    """Pallas/JAX port of the PyTorch `Readout` module (eval mode)."""

    def __init__(self, in_features, hidden, out_features, key):
        k1, k2, k3, k4, k5, k6 = jax.random.split(key, 6)
        s6 = 1.0 / jnp.sqrt(in_features)
        s7 = 1.0 / jnp.sqrt(hidden)
        s8 = 1.0 / jnp.sqrt(hidden)
        # Weights stored already transposed (in, out) and pre-cast to bf16
        # (one-time cost; halves weight HBM bytes every forward).
        self.w6 = jax.random.uniform(k1, (in_features, hidden), jnp.float32,
                                     -s6, s6).astype(jnp.bfloat16)
        self.b6 = jax.random.uniform(k2, (1, hidden), jnp.float32, -s6, s6)
        self.w7 = jax.random.uniform(k3, (hidden, hidden), jnp.float32,
                                     -s7, s7).astype(jnp.bfloat16)
        self.b7 = jax.random.uniform(k4, (1, hidden), jnp.float32, -s7, s7)
        self.w8 = jax.random.uniform(k5, (hidden, out_features), jnp.float32,
                                     -s8, s8).astype(jnp.bfloat16)
        self.b8 = jax.random.uniform(k6, (1, out_features), jnp.float32, -s8, s8)

    def __call__(self, x_nchw):
        return readout_forward(x_nchw, self.w6, self.b6, self.w7, self.b7,
                               self.w8, self.b8)


if __name__ == "__main__":
    key = jax.random.PRNGKey(0)
    kx, kp = jax.random.split(key)

    # Small shapes consistent with the module: NCHW input, flatten -> 3 Linear.
    B, C, H, W = 2, 8, 8, 8        # in_features = 512
    HIDDEN, OUT = 256, 128

    x = jax.random.normal(kx, (B, C, H, W), jnp.float32)
    model = ReadoutPallas(C * H * W, HIDDEN, OUT, kp)

    out = model(x)
    jax.block_until_ready(out)
    assert out.shape == (B, OUT) and out.dtype == jnp.float32

    # Pure-JAX reference with the same bf16-weight / f32-accumulate recipe.
    def ref(xin):
        h = xin.reshape(B, -1).astype(jnp.bfloat16)
        h = jnp.dot(h, model.w6, preferred_element_type=jnp.float32)
        h = jax.nn.sigmoid(h + model.b6)
        h = jnp.dot(h.astype(jnp.bfloat16), model.w7,
                    preferred_element_type=jnp.float32)
        h = jax.nn.sigmoid(h + model.b7)
        y = jnp.dot(h.astype(jnp.bfloat16), model.w8,
                    preferred_element_type=jnp.float32)
        return y + model.b8

    assert jnp.allclose(out, ref(x), atol=2e-2, rtol=2e-2)
    print("KERNEL_OK")
</pallas_src>

<mosaic_0001>
module attributes {stable_mosaic.version = 11 : i64} {
  func.func @_readout_fused_kernel(%arg0: i32, %arg1: memref<2x512xf32, #tpu.memory_space<vmem>>, %arg2: memref<512x256xbf16, #tpu.memory_space<vmem>>, %arg3: memref<1x256xf32, #tpu.memory_space<vmem>>, %arg4: memref<256x256xbf16, #tpu.memory_space<vmem>>, %arg5: memref<1x256xf32, #tpu.memory_space<vmem>>, %arg6: memref<256x128xbf16, #tpu.memory_space<vmem>>, %arg7: memref<1x128xf32, #tpu.memory_space<vmem>>, %arg8: memref<2x128xf32, #tpu.memory_space<vmem>>) attributes {dimension_semantics = [#tpu.dimension_semantics<arbitrary>], iteration_bounds = array<i64: 1>, scalar_prefetch = 0 : i64, scratch_operands = 0 : i64, tpu.core_type = #tpu.core_type<tc>, window_params = [{pipeline_mode = #tpu.pipeline_mode<synchronous>, transform_indices = @transform_0, window_bounds = array<i64: 2, 512>}, {pipeline_mode = #tpu.pipeline_mode<synchronous>, transform_indices = @transform_1, window_bounds = array<i64: 512, 256>}, {pipeline_mode = #tpu.pipeline_mode<synchronous>, transform_indices = @transform_2, window_bounds = array<i64: 1, 256>}, {pipeline_mode = #tpu.pipeline_mode<synchronous>, transform_indices = @transform_3, window_bounds = array<i64: 256, 256>}, {pipeline_mode = #tpu.pipeline_mode<synchronous>, transform_indices = @transform_4, window_bounds = array<i64: 1, 256>}, {pipeline_mode = #tpu.pipeline_mode<synchronous>, transform_indices = @transform_5, window_bounds = array<i64: 256, 128>}, {pipeline_mode = #tpu.pipeline_mode<synchronous>, transform_indices = @transform_6, window_bounds = array<i64: 1, 128>}, {pipeline_mode = #tpu.pipeline_mode<synchronous>, transform_indices = @transform_7, window_bounds = array<i64: 2, 128>}]} {
    %c0 = arith.constant 0 : index
    %c0_0 = arith.constant 0 : index
    %0 = vector.load %arg1[%c0, %c0_0] : memref<2x512xf32, #tpu.memory_space<vmem>>, vector<2x512xf32>
    %1 = arith.truncf %0 : vector<2x512xf32> to vector<2x512xbf16>
    %c0_1 = arith.constant 0 : index
    %c0_2 = arith.constant 0 : index
    %2 = vector.load %arg2[%c0_1, %c0_2] : memref<512x256xbf16, #tpu.memory_space<vmem>>, vector<512x256xbf16>
    %cst = arith.constant dense<0.000000e+00> : vector<2x256xf32>
    %3 = tpu.matmul %1, %2, %cst {dimension_numbers = #tpu.dot_dimension_numbers<[1], [0], [0], [1], [0, 0, 1, 1], [], []>} : vector<2x512xbf16>, vector<512x256xbf16>, vector<2x256xf32> -> vector<2x256xf32>
    %c0_3 = arith.constant 0 : index
    %c0_4 = arith.constant 0 : index
    %4 = vector.load %arg3[%c0_3, %c0_4] : memref<1x256xf32, #tpu.memory_space<vmem>>, vector<1x256xf32>
    %5 = vector.broadcast %4 : vector<1x256xf32> to vector<2x256xf32>
    %6 = arith.addf %3, %5 : vector<2x256xf32>
    %7 = arith.negf %6 : vector<2x256xf32>
    %8 = math.exp %7 : vector<2x256xf32>
    %cst_5 = arith.constant 1.000000e+00 : f32
    %9 = vector.broadcast %cst_5 : f32 to vector<2x256xf32>
    %10 = arith.addf %9, %8 : vector<2x256xf32>
    %11 = arith.divf %9, %10 : vector<2x256xf32>
    %12 = arith.truncf %11 : vector<2x256xf32> to vector<2x256xbf16>
    %c0_6 = arith.constant 0 : index
    %c0_7 = arith.constant 0 : index
    %13 = vector.load %arg4[%c0_6, %c0_7] : memref<256x256xbf16, #tpu.memory_space<vmem>>, vector<256x256xbf16>
    %cst_8 = arith.constant dense<0.000000e+00> : vector<2x256xf32>
    %14 = tpu.matmul %12, %13, %cst_8 {dimension_numbers = #tpu.dot_dimension_numbers<[1], [0], [0], [1], [0, 0, 1, 1], [], []>} : vector<2x256xbf16>, vector<256x256xbf16>, vector<2x256xf32> -> vector<2x256xf32>
    %c0_9 = arith.constant 0 : index
    %c0_10 = arith.constant 0 : index
    %15 = vector.load %arg5[%c0_9, %c0_10] : memref<1x256xf32, #tpu.memory_space<vmem>>, vector<1x256xf32>
    %16 = vector.broadcast %15 : vector<1x256xf32> to vector<2x256xf32>
    %17 = arith.addf %14, %16 : vector<2x256xf32>
    %18 = arith.negf %17 : vector<2x256xf32>
    %19 = math.exp %18 : vector<2x256xf32>
    %cst_11 = arith.constant 1.000000e+00 : f32
    %20 = vector.broadcast %cst_11 : f32 to vector<2x256xf32>
    %21 = arith.addf %20, %19 : vector<2x256xf32>
    %22 = arith.divf %20, %21 : vector<2x256xf32>
    %23 = arith.truncf %22 : vector<2x256xf32> to vector<2x256xbf16>
    %c0_12 = arith.constant 0 : index
    %c0_13 = arith.constant 0 : index
    %24 = vector.load %arg6[%c0_12, %c0_13] : memref<256x128xbf16, #tpu.memory_space<vmem>>, vector<256x128xbf16>
    %cst_14 = arith.constant dense<0.000000e+00> : vector<2x128xf32>
    %25 = tpu.matmul %23, %24, %cst_14 {dimension_numbers = #tpu.dot_dimension_numbers<[1], [0], [0], [1], [0, 0, 1, 1], [], []>} : vector<2x256xbf16>, vector<256x128xbf16>, vector<2x128xf32> -> vector<2x128xf32>
    %c0_15 = arith.constant 0 : index
    %c0_16 = arith.constant 0 : index
    %26 = vector.load %arg7[%c0_15, %c0_16] : memref<1x128xf32, #tpu.memory_space<vmem>>, vector<1x128xf32>
    %27 = vector.broadcast %26 : vector<1x128xf32> to vector<2x128xf32>
    %28 = arith.addf %25, %27 : vector<2x128xf32>
    %c0_17 = arith.constant 0 : index
    %c0_18 = arith.constant 0 : index
    %29 = vector.load %arg8[%c0_17, %c0_18] : memref<2x128xf32, #tpu.memory_space<vmem>>, vector<2x128xf32>
    tpu.vector_store %arg8[%c0_17, %c0_18], %28 {strides = array<i32>} : memref<2x128xf32, #tpu.memory_space<vmem>>, vector<2x128xf32>,
    return
  }
  func.func @transform_0(%arg0: i32) -> (i32, i32) {
    %c0_i32 = arith.constant 0 : i32
    %c0_i32_0 = arith.constant 0 : i32
    %c0_i32_1 = arith.constant 0 : i32
    return %c0_i32, %c0_i32_0 : i32, i32
  }
  func.func @transform_1(%arg0: i32) -> (i32, i32) {
    %c0_i32 = arith.constant 0 : i32
    %c0_i32_0 = arith.constant 0 : i32
    %c0_i32_1 = arith.constant 0 : i32
    return %c0_i32, %c0_i32_0 : i32, i32
  }
  func.func @transform_2(%arg0: i32) -> (i32, i32) {
    %c0_i32 = arith.constant 0 : i32
    %c0_i32_0 = arith.constant 0 : i32
    %c0_i32_1 = arith.constant 0 : i32
    return %c0_i32, %c0_i32_0 : i32, i32
  }
  func.func @transform_3(%arg0: i32) -> (i32, i32) {
    %c0_i32 = arith.constant 0 : i32
    %c0_i32_0 = arith.constant 0 : i32
    %c0_i32_1 = arith.constant 0 : i32
    return %c0_i32, %c0_i32_0 : i32, i32
  }
  func.func @transform_4(%arg0: i32) -> (i32, i32) {
    %c0_i32 = arith.constant 0 : i32
    %c0_i32_0 = arith.constant 0 : i32
    %c0_i32_1 = arith.constant 0 : i32
    return %c0_i32, %c0_i32_0 : i32, i32
  }
  func.func @transform_5(%arg0: i32) -> (i32, i32) {
    %c0_i32 = arith.constant 0 : i32
    %c0_i32_0 = arith.constant 0 : i32
    %c0_i32_1 = arith.constant 0 : i32
    return %c0_i32, %c0_i32_0 : i32, i32
  }
  func.func @transform_6(%arg0: i32) -> (i32, i32) {
    %c0_i32 = arith.constant 0 : i32
    %c0_i32_0 = arith.constant 0 : i32
    %c0_i32_1 = arith.constant 0 : i32
    return %c0_i32, %c0_i32_0 : i32, i32
  }
  func.func @transform_7(%arg0: i32) -> (i32, i32) {
    %c0_i32 = arith.constant 0 : i32
    %c0_i32_0 = arith.constant 0 : i32
    %c0_i32_1 = arith.constant 0 : i32
    return %c0_i32, %c0_i32_0 : i32, i32
  }
}

</mosaic_0001>

<llo_original>
// kernel: tpu_custom_call.1
$region0: #{tpu_custom_call.1}
  #allocation0 [shape = 'u32[]', space=smem, size = 0x4, offset = 0x4, fixed_abs, tag = 'smem constant byte address 0x4 - core index']
  #allocation1 [shape = 'u32[144,128]{1,0:T(1,128)}', space=vmem, size = 0x12000, scoped, tag = 'internal scratch']
  %s0 = inlined_call_operand.hbm [shape: f32[2,512], index: 0, kind: input, shape index: {}]
  %s1 = inlined_call_operand.hbm [shape: bf16[512,256], index: 1, kind: input, shape index: {}]
  %s2 = inlined_call_operand.vmem [shape: f32[1,256], index: 2, kind: input, shape index: {}]
  %s3 = inlined_call_operand.hbm [shape: bf16[256,256], index: 3, kind: input, shape index: {}]
  %s4 = inlined_call_operand.vmem [shape: f32[1,256], index: 4, kind: input, shape index: {}]
  %s5 = inlined_call_operand.hbm [shape: bf16[256,128], index: 5, kind: input, shape index: {}]
  %s6 = inlined_call_operand.vmem [shape: f32[1,128], index: 6, kind: input, shape index: {}]
  %s7 = inlined_call_operand.hbm [shape: f32[2,128], index: 7, kind: output, shape index: {}]
  %s8 = sld [smem:[#allocation0]]
  $region54: #{tpu_custom_call.1} parent=0
    _
  %s10 = ssub.s32 1, %s8
  %s11 = scalar_select 0, %s10, %s8
  $region1: #{tpu_custom_call.1} parent=0
    #allocation2 [shape = 'u8[4096]{0}', space=vmem, size = 0x1000, scoped, tag = 'input window, operand 0, single buffered']
    #allocation3 [shape = 's32[1]{0}', space=sflag, size = 0x4, scoped, tag = 'scoped memory for tpu_custom_call.1']
    #allocation4 [shape = 's32[1]{0}', space=sflag, size = 0x4, scoped, tag = 'scoped memory for tpu_custom_call.1']
    #allocation5 [shape = 'u8[262144]{0}', space=vmem, size = 0x40000, scoped, tag = 'input window, operand 1, single buffered']
    #allocation6 [shape = 's32[1]{0}', space=sflag, size = 0x4, scoped, tag = 'scoped memory for tpu_custom_call.1']
    #allocation7 [shape = 'u8[131072]{0}', space=vmem, size = 0x20000, scoped, tag = 'input window, operand 3, single buffered']
    #allocation8 [shape = 'u8[65536]{0}', space=vmem, size = 0x10000, scoped, tag = 'input window, operand 5, single buffered']
    #allocation9 [shape = 's32[1]{0}', space=sflag, size = 0x4, scoped, tag = 'scoped memory for tpu_custom_call.1']
    #allocation10 [shape = 'u8[1024]{0}', space=vmem, size = 0x400, scoped, tag = 'output window, operand 0, single buffered']
    %12 = vsyncpa [#allocation3], 0
    %13 = vsyncpa [#allocation6], 0
    %14 = vsyncpa [#allocation9], 0
    %15 = vsyncpa [#allocation4], 0
    // Predicated region
    $region2: #{tpu_custom_call.1} parent=1 // pred_check
      _
    $region3: #{tpu_custom_call.1} parent=1 // pred_check_branch
      %17 = sbr.rel (0) target = $region5
    $region4: #{tpu_custom_call.1} parent=1 // pred_region
      %s19 = ssub.s32 128, 128
      %20 = vsyncadd [#allocation3], %s19
      %s22 = sshll.u32 [#allocation2], 4
      %s23 = int_to_ptr.vmem [resolvable:$true] %s22
      %25 = dma.hbm_to_vmem [thread:$0]  %s0, 128, %s23, [#allocation3]
    $region5: #{tpu_custom_call.1} parent=1 // pred_fallthru
      _
    // Predicated region
    $region6: #{tpu_custom_call.1} parent=1 // pred_check
      _
    $region7: #{tpu_custom_call.1} parent=1 // pred_check_branch
      %27 = sbr.rel (0) target = $region9
    $region8: #{tpu_custom_call.1} parent=1 // pred_region
      %s29 = ssub.s32 8192, 8192
      %30 = vsyncadd [#allocation6], %s29
      %s31 = sshll.u32 [#allocation5], 4
      %s32 = int_to_ptr.vmem [resolvable:$true] %s31
      %37 = dma.hbm_to_vmem [thread:$0]  %s1, 8192, %s32, [#allocation6], 128, 128, 8
    $region9: #{tpu_custom_call.1} parent=1 // pred_fallthru
      _
    // Predicated region
    $region10: #{tpu_custom_call.1} parent=1 // pred_check
      _
    $region11: #{tpu_custom_call.1} parent=1 // pred_check_branch
      %39 = sbr.rel (0) target = $region13
    $region12: #{tpu_custom_call.1} parent=1 // pred_region
      _
    $region13: #{tpu_custom_call.1} parent=1 // pred_fallthru
      _
    // Predicated region
    $region14: #{tpu_custom_call.1} parent=1 // pred_check
      _
    $region15: #{tpu_custom_call.1} parent=1 // pred_check_branch
      %41 = sbr.rel (0) target = $region17
    $region16: #{tpu_custom_call.1} parent=1 // pred_region
      %s43 = ssub.s32 4096, 4096
      %44 = vsyncadd [#allocation6], %s43
      %s45 = sshll.u32 [#allocation7], 4
      %s46 = int_to_ptr.vmem [resolvable:$true] %s45
      %51 = dma.hbm_to_vmem [thread:$0]  %s3, 4096, %s46, [#allocation6], 128, 128, 8
    $region17: #{tpu_custom_call.1} parent=1 // pred_fallthru
      _
    // Predicated region
    $region18: #{tpu_custom_call.1} parent=1 // pred_check
      _
    $region19: #{tpu_custom_call.1} parent=1 // pred_check_branch
      %53 = sbr.rel (0) target = $region21
    $region20: #{tpu_custom_call.1} parent=1 // pred_region
      _
    $region21: #{tpu_custom_call.1} parent=1 // pred_fallthru
      _
    // Predicated region
    $region22: #{tpu_custom_call.1} parent=1 // pred_check
      _
    $region23: #{tpu_custom_call.1} parent=1 // pred_check_branch
      %55 = sbr.rel (0) target = $region25
    $region24: #{tpu_custom_call.1} parent=1 // pred_region
      %s57 = ssub.s32 2048, 2048
      %58 = vsyncadd [#allocation9], %s57
      %s59 = sshll.u32 [#allocation8], 4
      %s60 = int_to_ptr.vmem [resolvable:$true] %s59
      %65 = dma.hbm_to_vmem [thread:$0]  %s5, 2048, %s60, [#allocation9], 64, 64, 4
    $region25: #{tpu_custom_call.1} parent=1 // pred_fallthru
      _
    // Predicated region
    $region26: #{tpu_custom_call.1} parent=1 // pred_check
      _
    $region27: #{tpu_custom_call.1} parent=1 // pred_check_branch
      %67 = sbr.rel (0) target = $region29
    $region28: #{tpu_custom_call.1} parent=1 // pred_region
      _
    $region29: #{tpu_custom_call.1} parent=1 // pred_fallthru
      _
    // Predicated region
    $region30: #{tpu_custom_call.1} parent=1 // pred_check
      _
    $region31: #{tpu_custom_call.1} parent=1 // pred_check_branch
      %69 = sbr.rel (0) target = $region33
    $region32: #{tpu_custom_call.1} parent=1 // pred_region
      %70 = dma.done [#allocation3], 128
    $region33: #{tpu_custom_call.1} parent=1 // pred_fallthru
      _
    // Predicated region
    $region34: #{tpu_custom_call.1} parent=1 // pred_check
      _
    $region35: #{tpu_custom_call.1} parent=1 // pred_check_branch
      %72 = sbr.rel (0) target = $region37
    $region36: #{tpu_custom_call.1} parent=1 // pred_region
      %73 = dma.done [#allocation6], 8192
    $region37: #{tpu_custom_call.1} parent=1 // pred_fallthru
      _
    // Predicated region
    $region38: #{tpu_custom_call.1} parent=1 // pred_check
      _
    $region39: #{tpu_custom_call.1} parent=1 // pred_check_branch
      %75 = sbr.rel (0) target = $region41
    $region40: #{tpu_custom_call.1} parent=1 // pred_region
      %76 = dma.done [#allocation6], 4096
    $region41: #{tpu_custom_call.1} parent=1 // pred_fallthru
      _
    // Predicated region
    $region42: #{tpu_custom_call.1} parent=1 // pred_check
      _
    $region43: #{tpu_custom_call.1} parent=1 // pred_check_branch
      %78 = sbr.rel (0) target = $region45
    $region44: #{tpu_custom_call.1} parent=1 // pred_region
      %79 = dma.done [#allocation9], 2048
    $region45: #{tpu_custom_call.1} parent=1 // pred_fallthru
      _
    %v81 = vld [vmem:[#allocation2] sm:$0xff]
    %v83 = vcombine.high %v81, %v81
    %v85 = vunpack.c.l.s4 1983009808
    %v86 = vunpack.c.0.s8 %v85
    %v87 = vlaneseq
    %v88 = vshrl.u32 %v87, 7
    %v89 = vsub.s32 %v86, %v88
    %v90 = vrot.slane %v81, %v89
    %v92 = vunpack.c.l.s4 1983009808
    %v93 = vunpack.c.0.s8 %v92
    %v94 = vlaneseq
    %v95 = vshrl.u32 %v94, 7
    %v96 = vsub.s32 %v93, %v95
    %v97 = vrot.slane %v83, %v96
    %v98 = vcombine.high %v90, %v90
    %v99 = vcombine.high %v97, %v97
    %v104 = vpack.c.bf16 %v90, %v90
    %v105 = vpack.c.bf16 %v98, %v98
    %v106 = vpack.c.bf16 %v97, %v97
    %v107 = vpack.c.bf16 %v99, %v99
    %v108 = vld [vmem:[#allocation5] sm:$0xff]
    %v109 = vld [vmem:[#allocation5 + $0x8] sm:$0xff]
    %v110 = vld [vmem:[#allocation5 + $0x10] sm:$0xff]
    %v111 = vld [vmem:[#allocation5 + $0x18] sm:$0xff]
    %v112 = vld [vmem:[#allocation5 + $0x20] sm:$0xff]
    %v113 = vld [vmem:[#allocation5 + $0x28] sm:$0xff]
    %v114 = vld [vmem:[#allocation5 + $0x30] sm:$0xff]
    %v115 = vld [vmem:[#allocation5 + $0x38] sm:$0xff]
    %v116 = vld [vmem:[#allocation5 + $0x40] sm:$0xff]
    %v117 = vld [vmem:[#allocation5 + $0x48] sm:$0xff]
    %v118 = vld [vmem:[#allocation5 + $0x50] sm:$0xff]
    %v119 = vld [vmem:[#allocation5 + $0x58] sm:$0xff]
    %v120 = vld [vmem:[#allocation5 + $0x60] sm:$0xff]
    %v121 = vld [vmem:[#allocation5 + $0x68] sm:$0xff]
    %v122 = vld [vmem:[#allocation5 + $0x70] sm:$0xff]
    %v123 = vld [vmem:[#allocation5 + $0x78] sm:$0xff]
    %v124 = vld [vmem:[#allocation5 + $0x80] sm:$0xff]
    %v125 = vld [vmem:[#allocation5 + $0x88] sm:$0xff]
    %v126 = vld [vmem:[#allocation5 + $0x90] sm:$0xff]
    %v127 = vld [vmem:[#allocation5 + $0x98] sm:$0xff]
    %v128 = vld [vmem:[#allocation5 + $0xa0] sm:$0xff]
    %v129 = vld [vmem:[#allocation5 + $0xa8] sm:$0xff]
    %v130 = vld [vmem:[#allocation5 + $0xb0] sm:$0xff]
    %v131 = vld [vmem:[#allocation5 + $0xb8] sm:$0xff]
    %v132 = vld [vmem:[#allocation5 + $0xc0] sm:$0xff]
    %v133 = vld [vmem:[#allocation5 + $0xc8] sm:$0xff]
    %v134 = vld [vmem:[#allocation5 + $0xd0] sm:$0xff]
    %v135 = vld [vmem:[#allocation5 + $0xd8] sm:$0xff]
    %v136 = vld [vmem:[#allocation5 + $0xe0] sm:$0xff]
    %v137 = vld [vmem:[#allocation5 + $0xe8] sm:$0xff]
    %v138 = vld [vmem:[#allocation5 + $0xf0] sm:$0xff]
    %v139 = vld [vmem:[#allocation5 + $0xf8] sm:$0xff]
    %v140 = vld [vmem:[#allocation5 + $0x100] sm:$0xff]
    %v141 = vld [vmem:[#allocation5 + $0x108] sm:$0xff]
    %v142 = vld [vmem:[#allocation5 + $0x110] sm:$0xff]
    %v143 = vld [vmem:[#allocation5 + $0x118] sm:$0xff]
    %v144 = vld [vmem:[#allocation5 + $0x120] sm:$0xff]
    %v145 = vld [vmem:[#allocation5 + $0x128] sm:$0xff]
    %v146 = vld [vmem:[#allocation5 + $0x130] sm:$0xff]
    %v147 = vld [vmem:[#allocation5 + $0x138] sm:$0xff]
    %v148 = vld [vmem:[#allocation5 + $0x140] sm:$0xff]
    %v149 = vld [vmem:[#allocation5 + $0x148] sm:$0xff]
    %v150 = vld [vmem:[#allocation5 + $0x150] sm:$0xff]
    %v151 = vld [vmem:[#allocation5 + $0x158] sm:$0xff]
    %v152 = vld [vmem:[#allocation5 + $0x160] sm:$0xff]
    %v153 = vld [vmem:[#allocation5 + $0x168] sm:$0xff]
    %v154 = vld [vmem:[#allocation5 + $0x170] sm:$0xff]
    %v155 = vld [vmem:[#allocation5 + $0x178] sm:$0xff]
    %v156 = vld [vmem:[#allocation5 + $0x180] sm:$0xff]
    %v157 = vld [vmem:[#allocation5 + $0x188] sm:$0xff]
    %v158 = vld [vmem:[#allocation5 + $0x190] sm:$0xff]
    %v159 = vld [vmem:[#allocation5 + $0x198] sm:$0xff]
    %v160 = vld [vmem:[#allocation5 + $0x1a0] sm:$0xff]
    %v161 = vld [vmem:[#allocation5 + $0x1a8] sm:$0xff]
    %v162 = vld [vmem:[#allocation5 + $0x1b0] sm:$0xff]
    %v163 = vld [vmem:[#allocation5 + $0x1b8] sm:$0xff]
    %v164 = vld [vmem:[#allocation5 + $0x1c0] sm:$0xff]
    %v165 = vld [vmem:[#allocation5 + $0x1c8] sm:$0xff]
    %v166 = vld [vmem:[#allocation5 + $0x1d0] sm:$0xff]
    %v167 = vld [vmem:[#allocation5 + $0x1d8] sm:$0xff]
    %v168 = vld [vmem:[#allocation5 + $0x1e0] sm:$0xff]
    %v169 = vld [vmem:[#allocation5 + $0x1e8] sm:$0xff]
    %v170 = vld [vmem:[#allocation5 + $0x1f0] sm:$0xff]
    %v171 = vld [vmem:[#allocation5 + $0x1f8] sm:$0xff]
    %v172 = vld [vmem:[%s2] sm:$0x3]
    %v174 = vlaneseq
    %v175 = vshrl.u32 %v174, 7
    %v176 = vsub.s32 0, %v175
    %v177 = vrot.slane %v172, %v176
    %v178 = vlaneseq
    %v179 = vshrl.u32 %v178, 7
    %v180 = vsub.s32 1, %v179
    %v181 = vrot.slane %v172, %v180
    %v248 = vunpack.c.l.b16 %v108
    %v249 = vunpack.c.h.b16 %v108
    %v250 = vunpack.c.l.b16 %v109
    %v251 = vunpack.c.h.b16 %v109
    %v252 = vunpack.c.l.b16 %v110
    %v253 = vunpack.c.h.b16 %v110
    %v254 = vunpack.c.l.b16 %v111
    %v255 = vunpack.c.h.b16 %v111
    %v256 = vunpack.c.l.b16 %v112
    %v257 = vunpack.c.h.b16 %v112
    %v258 = vunpack.c.l.b16 %v113
    %v259 = vunpack.c.h.b16 %v113
    %v260 = vunpack.c.l.b16 %v114
    %v261 = vunpack.c.h.b16 %v114
    %v262 = vunpack.c.l.b16 %v115
    %v263 = vunpack.c.h.b16 %v115
    %v264 = vunpack.c.l.b16 %v116
    %v265 = vunpack.c.h.b16 %v116
    %v266 = vunpack.c.l.b16 %v117
    %v267 = vunpack.c.h.b16 %v117
    %v268 = vunpack.c.l.b16 %v118
    %v269 = vunpack.c.h.b16 %v118
    %v270 = vunpack.c.l.b16 %v119
    %v271 = vunpack.c.h.b16 %v119
    %v272 = vunpack.c.l.b16 %v120
    %v273 = vunpack.c.h.b16 %v120
    %v274 = vunpack.c.l.b16 %v121
    %v275 = vunpack.c.h.b16 %v121
    %v276 = vunpack.c.l.b16 %v122
    %v277 = vunpack.c.h.b16 %v122
    %v278 = vunpack.c.l.b16 %v123
    %v279 = vunpack.c.h.b16 %v123
    %v280 = vunpack.c.l.b16 %v124
    %v281 = vunpack.c.h.b16 %v124
    %v282 = vunpack.c.l.b16 %v125
    %v283 = vunpack.c.h.b16 %v125
    %v284 = vunpack.c.l.b16 %v126
    %v285 = vunpack.c.h.b16 %v126
    %v286 = vunpack.c.l.b16 %v127
    %v287 = vunpack.c.h.b16 %v127
    %v288 = vunpack.c.l.b16 %v128
    %v289 = vunpack.c.h.b16 %v128
    %v290 = vunpack.c.l.b16 %v129
    %v291 = vunpack.c.h.b16 %v129
    %v292 = vunpack.c.l.b16 %v130
    %v293 = vunpack.c.h.b16 %v130
    %v294 = vunpack.c.l.b16 %v131
    %v295 = vunpack.c.h.b16 %v131
    %v296 = vunpack.c.l.b16 %v132
    %v297 = vunpack.c.h.b16 %v132
    %v298 = vunpack.c.l.b16 %v133
    %v299 = vunpack.c.h.b16 %v133
    %v300 = vunpack.c.l.b16 %v134
    %v301 = vunpack.c.h.b16 %v134
    %v302 = vunpack.c.l.b16 %v135
    %v303 = vunpack.c.h.b16 %v135
    %v304 = vunpack.c.l.b16 %v136
    %v305 = vunpack.c.h.b16 %v136
    %v306 = vunpack.c.l.b16 %v137
    %v307 = vunpack.c.h.b16 %v137
    %v308 = vunpack.c.l.b16 %v138
    %v309 = vunpack.c.h.b16 %v138
    %v310 = vunpack.c.l.b16 %v139
    %v311 = vunpack.c.h.b16 %v139
    %v312 = vunpack.c.l.b16 %v140
    %v313 = vunpack.c.h.b16 %v140
    %v314 = vunpack.c.l.b16 %v141
    %v315 = vunpack.c.h.b16 %v141
    %v316 = vunpack.c.l.b16 %v142
    %v317 = vunpack.c.h.b16 %v142
    %v318 = vunpack.c.l.b16 %v143
    %v319 = vunpack.c.h.b16 %v143
    %v320 = vunpack.c.l.b16 %v144
    %v321 = vunpack.c.h.b16 %v144
    %v322 = vunpack.c.l.b16 %v145
    %v323 = vunpack.c.h.b16 %v145
    %v324 = vunpack.c.l.b16 %v146
    %v325 = vunpack.c.h.b16 %v146
    %v326 = vunpack.c.l.b16 %v147
    %v327 = vunpack.c.h.b16 %v147
    %v328 = vunpack.c.l.b16 %v148
    %v329 = vunpack.c.h.b16 %v148
    %v330 = vunpack.c.l.b16 %v149
    %v331 = vunpack.c.h.b16 %v149
    %v332 = vunpack.c.l.b16 %v150
    %v333 = vunpack.c.h.b16 %v150
    %v334 = vunpack.c.l.b16 %v151
    %v335 = vunpack.c.h.b16 %v151
    %v336 = vunpack.c.l.b16 %v152
    %v337 = vunpack.c.h.b16 %v152
    %v338 = vunpack.c.l.b16 %v153
    %v339 = vunpack.c.h.b16 %v153
    %v340 = vunpack.c.l.b16 %v154
    %v341 = vunpack.c.h.b16 %v154
    %v342 = vunpack.c.l.b16 %v155
    %v343 = vunpack.c.h.b16 %v155
    %v344 = vunpack.c.l.b16 %v156
    %v345 = vunpack.c.h.b16 %v156
    %v346 = vunpack.c.l.b16 %v157
    %v347 = vunpack.c.h.b16 %v157
    %v348 = vunpack.c.l.b16 %v158
    %v349 = vunpack.c.h.b16 %v158
    %v350 = vunpack.c.l.b16 %v159
    %v351 = vunpack.c.h.b16 %v159
    %v352 = vunpack.c.l.b16 %v160
    %v353 = vunpack.c.h.b16 %v160
    %v354 = vunpack.c.l.b16 %v161
    %v355 = vunpack.c.h.b16 %v161
    %v356 = vunpack.c.l.b16 %v162
    %v357 = vunpack.c.h.b16 %v162
    %v358 = vunpack.c.l.b16 %v163
    %v359 = vunpack.c.h.b16 %v163
    %v360 = vunpack.c.l.b16 %v164
    %v361 = vunpack.c.h.b16 %v164
    %v362 = vunpack.c.l.b16 %v165
    %v363 = vunpack.c.h.b16 %v165
    %v364 = vunpack.c.l.b16 %v166
    %v365 = vunpack.c.h.b16 %v166
    %v366 = vunpack.c.l.b16 %v167
    %v367 = vunpack.c.h.b16 %v167
    %v368 = vunpack.c.l.b16 %v168
    %v369 = vunpack.c.h.b16 %v168
    %v370 = vunpack.c.l.b16 %v169
    %v371 = vunpack.c.h.b16 %v169
    %v372 = vunpack.c.l.b16 %v170
    %v373 = vunpack.c.h.b16 %v170
    %v374 = vunpack.c.l.b16 %v171
    %v375 = vunpack.c.h.b16 %v171
    %v376 = vpack.c.b16 %v250, %v248
    %v377 = vpack.c.b16 %v251, %v249
    %v378 = vpack.c.b16 %v254, %v252
    %v379 = vpack.c.b16 %v255, %v253
    %v380 = vpack.c.b16 %v258, %v256
    %v381 = vpack.c.b16 %v259, %v257
    %v382 = vpack.c.b16 %v262, %v260
    %v383 = vpack.c.b16 %v263, %v261
    %v384 = vpack.c.b16 %v266, %v264
    %v385 = vpack.c.b16 %v267, %v265
    %v386 = vpack.c.b16 %v270, %v268
    %v387 = vpack.c.b16 %v271, %v269
    %v388 = vpack.c.b16 %v274, %v272
    %v389 = vpack.c.b16 %v275, %v273
    %v390 = vpack.c.b16 %v278, %v276
    %v391 = vpack.c.b16 %v279, %v277
    %v392 = vpack.c.b16 %v282, %v280
    %v393 = vpack.c.b16 %v283, %v281
    %v394 = vpack.c.b16 %v286, %v284
    %v395 = vpack.c.b16 %v287, %v285
    %v396 = vpack.c.b16 %v290, %v288
    %v397 = vpack.c.b16 %v291, %v289
    %v398 = vpack.c.b16 %v294, %v292
    %v399 = vpack.c.b16 %v295, %v293
    %v400 = vpack.c.b16 %v298, %v296
    %v401 = vpack.c.b16 %v299, %v297
    %v402 = vpack.c.b16 %v302, %v300
    %v403 = vpack.c.b16 %v303, %v301
    %v404 = vpack.c.b16 %v306, %v304
    %v405 = vpack.c.b16 %v307, %v305
    %v406 = vpack.c.b16 %v310, %v308
    %v407 = vpack.c.b16 %v311, %v309
    %v408 = vpack.c.b16 %v314, %v312
    %v409 = vpack.c.b16 %v315, %v313
    %v410 = vpack.c.b16 %v318, %v316
    %v411 = vpack.c.b16 %v319, %v317
    %v412 = vpack.c.b16 %v322, %v320
    %v413 = vpack.c.b16 %v323, %v321
    %v414 = vpack.c.b16 %v326, %v324
    %v415 = vpack.c.b16 %v327, %v325
    %v416 = vpack.c.b16 %v330, %v328
    %v417 = vpack.c.b16 %v331, %v329
    %v418 = vpack.c.b16 %v334, %v332
    %v419 = vpack.c.b16 %v335, %v333
    %v420 = vpack.c.b16 %v338, %v336
    %v421 = vpack.c.b16 %v339, %v337
    %v422 = vpack.c.b16 %v342, %v340
    %v423 = vpack.c.b16 %v343, %v341
    %v424 = vpack.c.b16 %v346, %v344
    %v425 = vpack.c.b16 %v347, %v345
    %v426 = vpack.c.b16 %v350, %v348
    %v427 = vpack.c.b16 %v351, %v349
    %v428 = vpack.c.b16 %v354, %v352
    %v429 = vpack.c.b16 %v355, %v353
    %v430 = vpack.c.b16 %v358, %v356
    %v431 = vpack.c.b16 %v359, %v357
    %v432 = vpack.c.b16 %v362, %v360
    %v433 = vpack.c.b16 %v363, %v361
    %v434 = vpack.c.b16 %v366, %v364
    %v435 = vpack.c.b16 %v367, %v365
    %v436 = vpack.c.b16 %v370, %v368
    %v437 = vpack.c.b16 %v371, %v369
    %v438 = vpack.c.b16 %v374, %v372
    %v439 = vpack.c.b16 %v375, %v373
    %504 = vmatprep.subr.bf16.mxu0 %v377
    %505 = vmatpush1.bf16.msra.mxu0 %v376
    %506 = vmatprep.subr.bf16.mxu0 %v379
    %507 = vmatpush1.bf16.msra.mxu0 %v378
    %508 = vmatprep.subr.bf16.mxu0 %v381
    %509 = vmatpush1.bf16.msra.mxu0 %v380
    %510 = vmatprep.subr.bf16.mxu0 %v383
    %511 = vmatpush1.bf16.msra.mxu0 %v382
    %512 = vmatprep.subr.bf16.mxu0 %v385
    %513 = vmatpush1.bf16.msra.mxu0 %v384
    %514 = vmatprep.subr.bf16.mxu0 %v387
    %515 = vmatpush1.bf16.msra.mxu0 %v386
    %516 = vmatprep.subr.bf16.mxu0 %v389
    %517 = vmatpush1.bf16.msra.mxu0 %v388
    %518 = vmatprep.subr.bf16.mxu0 %v391
    %519 = vmatpush1.bf16.msra.mxu0 %v390
    %520 = vmatprep.subr.bf16.mxu0 %v393
    %521 = vmatpush1.bf16.msra.mxu0 %v392
    %522 = vmatprep.subr.bf16.mxu0 %v395
    %523 = vmatpush1.bf16.msra.mxu0 %v394
    %524 = vmatprep.subr.bf16.mxu0 %v397
    %525 = vmatpush1.bf16.msra.mxu0 %v396
    %526 = vmatprep.subr.bf16.mxu0 %v399
    %527 = vmatpush1.bf16.msra.mxu0 %v398
    %528 = vmatprep.subr.bf16.mxu0 %v401
    %529 = vmatpush1.bf16.msra.mxu0 %v400
    %530 = vmatprep.subr.bf16.mxu0 %v403
    %531 = vmatpush1.bf16.msra.mxu0 %v402
    %532 = vmatprep.subr.bf16.mxu0 %v405
    %533 = vmatpush1.bf16.msra.mxu0 %v404
    %534 = vmatprep.subr.bf16.mxu0 %v407
    %535 = vmatpush1.bf16.msra.mxu0 %v406
    %536 = vmatprep.mubr.bf16.mxu0 %v105
    %537 = vmatmul.mubr.bf16.gmra.mrb[0].mxu0 %v104
    %v538 = vpop.f32.mrb[0].mxu0
    %v539 = vadd.f32 %v177, %v538
    %v540 = vpop.f32.mrb[0].mxu0
    %v541 = vadd.f32 %v181, %v540
    %v542 = vpop.f32.mrb[0].mxu0
    %v543 = vpop.f32.mrb[0].mxu0
    %544 = vdwg.mxu0
    %545 = vmatprep.subr.bf16.mxu0 %v409
    %546 = vmatpush1.bf16.msra.mxu0 %v408
    %547 = vmatprep.subr.bf16.mxu0 %v411
    %548 = vmatpush1.bf16.msra.mxu0 %v410
    %549 = vmatprep.subr.bf16.mxu0 %v413
    %550 = vmatpush1.bf16.msra.mxu0 %v412
    %551 = vmatprep.subr.bf16.mxu0 %v415
    %552 = vmatpush1.bf16.msra.mxu0 %v414
    %553 = vmatprep.subr.bf16.mxu0 %v417
    %554 = vmatpush1.bf16.msra.mxu0 %v416
    %555 = vmatprep.subr.bf16.mxu0 %v419
    %556 = vmatpush1.bf16.msra.mxu0 %v418
    %557 = vmatprep.subr.bf16.mxu0 %v421
    %558 = vmatpush1.bf16.msra.mxu0 %v420
    %559 = vmatprep.subr.bf16.mxu0 %v423
    %560 = vmatpush1.bf16.msra.mxu0 %v422
    %561 = vmatprep.subr.bf16.mxu0 %v425
    %562 = vmatpush1.bf16.msra.mxu0 %v424
    %563 = vmatprep.subr.bf16.mxu0 %v427
    %564 = vmatpush1.bf16.msra.mxu0 %v426
    %565 = vmatprep.subr.bf16.mxu0 %v429
    %566 = vmatpush1.bf16.msra.mxu0 %v428
    %567 = vmatprep.subr.bf16.mxu0 %v431
    %568 = vmatpush1.bf16.msra.mxu0 %v430
    %569 = vmatprep.subr.bf16.mxu0 %v433
    %570 = vmatpush1.bf16.msra.mxu0 %v432
    %571 = vmatprep.subr.bf16.mxu0 %v435
    %572 = vmatpush1.bf16.msra.mxu0 %v434
    %573 = vmatprep.subr.bf16.mxu0 %v437
    %574 = vmatpush1.bf16.msra.mxu0 %v436
    %575 = vmatprep.subr.bf16.mxu0 %v439
    %576 = vmatpush1.bf16.msra.mxu0 %v438
    %577 = vmatprep.mubr.bf16.mxu0 %v107
    %578 = vmatmul.mubr.bf16.gmra.mrb[0].mxu0 %v106
    %v579 = vpop.f32.mrb[0].mxu0
    %v580 = vadd.f32 %v539, %v579
    %v581 = vpop.f32.mrb[0].mxu0
    %v582 = vadd.f32 %v541, %v581
    %v583 = vpop.f32.mrb[0].mxu0
    %v584 = vpop.f32.mrb[0].mxu0
    %585 = vdwg.mxu0
    %v586 = vxor.u32 %v580, 2147483648
    %v587 = vxor.u32 %v582, 2147483648
    %v588 = vmul.f32 %v586, 1.442695
    %v589 = vpow.pop %v588
    %v590 = vmul.f32 %v587, 1.442695
    %v591 = vpow.pop %v590
    %v592 = vadd.f32 %v589, 1.0
    %v593 = vadd.f32 %v591, 1.0
    %v594 = vrcp.pop %v592
    %v595 = vmul.f32 1.0, %v594
    %v596 = vrcp.pop %v593
    %v597 = vmul.f32 1.0, %v596
    %v598 = vpack.c.bf16 %v595, %v595
    %v599 = vpack.c.bf16 %v597, %v597
    %v600 = vld [vmem:[#allocation7] sm:$0xff]
    %v601 = vld [vmem:[#allocation7 + $0x8] sm:$0xff]
    %v602 = vld [vmem:[#allocation7 + $0x10] sm:$0xff]
    %v603 = vld [vmem:[#allocation7 + $0x18] sm:$0xff]
    %v604 = vld [vmem:[#allocation7 + $0x20] sm:$0xff]
    %v605 = vld [vmem:[#allocation7 + $0x28] sm:$0xff]
    %v606 = vld [vmem:[#allocation7 + $0x30] sm:$0xff]
    %v607 = vld [vmem:[#allocation7 + $0x38] sm:$0xff]
    %v608 = vld [vmem:[#allocation7 + $0x40] sm:$0xff]
    %v609 = vld [vmem:[#allocation7 + $0x48] sm:$0xff]
    %v610 = vld [vmem:[#allocation7 + $0x50] sm:$0xff]
    %v611 = vld [vmem:[#allocation7 + $0x58] sm:$0xff]
    %v612 = vld [vmem:[#allocation7 + $0x60] sm:$0xff]
    %v613 = vld [vmem:[#allocation7 + $0x68] sm:$0xff]
    %v614 = vld [vmem:[#allocation7 + $0x70] sm:$0xff]
    %v615 = vld [vmem:[#allocation7 + $0x78] sm:$0xff]
    %v616 = vld [vmem:[#allocation7 + $0x80] sm:$0xff]
    %v617 = vld [vmem:[#allocation7 + $0x88] sm:$0xff]
    %v618 = vld [vmem:[#allocation7 + $0x90] sm:$0xff]
    %v619 = vld [vmem:[#allocation7 + $0x98] sm:$0xff]
    %v620 = vld [vmem:[#allocation7 + $0xa0] sm:$0xff]
    %v621 = vld [vmem:[#allocation7 + $0xa8] sm:$0xff]
    %v622 = vld [vmem:[#allocation7 + $0xb0] sm:$0xff]
    %v623 = vld [vmem:[#allocation7 + $0xb8] sm:$0xff]
    %v624 = vld [vmem:[#allocation7 + $0xc0] sm:$0xff]
    %v625 = vld [vmem:[#allocation7 + $0xc8] sm:$0xff]
    %v626 = vld [vmem:[#allocation7 + $0xd0] sm:$0xff]
    %v627 = vld [vmem:[#allocation7 + $0xd8] sm:$0xff]
    %v628 = vld [vmem:[#allocation7 + $0xe0] sm:$0xff]
    %v629 = vld [vmem:[#allocation7 + $0xe8] sm:$0xff]
    %v630 = vld [vmem:[#allocation7 + $0xf0] sm:$0xff]
    %v631 = vld [vmem:[#allocation7 + $0xf8] sm:$0xff]
    %v632 = vld [vmem:[%s4] sm:$0x3]
    %v634 = vlaneseq
    %v635 = vshrl.u32 %v634, 7
    %v636 = vsub.s32 0, %v635
    %v637 = vrot.slane %v632, %v636
    %v638 = vlaneseq
    %v639 = vshrl.u32 %v638, 7
    %v640 = vsub.s32 1, %v639
    %v641 = vrot.slane %v632, %v640
    %v676 = vunpack.c.l.b16 %v600
    %v677 = vunpack.c.h.b16 %v600
    %v678 = vunpack.c.l.b16 %v601
    %v679 = vunpack.c.h.b16 %v601
    %v680 = vunpack.c.l.b16 %v602
    %v681 = vunpack.c.h.b16 %v602
    %v682 = vunpack.c.l.b16 %v603
    %v683 = vunpack.c.h.b16 %v603
    %v684 = vunpack.c.l.b16 %v604
    %v685 = vunpack.c.h.b16 %v604
    %v686 = vunpack.c.l.b16 %v605
    %v687 = vunpack.c.h.b16 %v605
    %v688 = vunpack.c.l.b16 %v606
    %v689 = vunpack.c.h.b16 %v606
    %v690 = vunpack.c.l.b16 %v607
    %v691 = vunpack.c.h.b16 %v607
    %v692 = vunpack.c.l.b16 %v608
    %v693 = vunpack.c.h.b16 %v608
    %v694 = vunpack.c.l.b16 %v609
    %v695 = vunpack.c.h.b16 %v609
    %v696 = vunpack.c.l.b16 %v610
    %v697 = vunpack.c.h.b16 %v610
    %v698 = vunpack.c.l.b16 %v611
    %v699 = vunpack.c.h.b16 %v611
    %v700 = vunpack.c.l.b16 %v612
    %v701 = vunpack.c.h.b16 %v612
    %v702 = vunpack.c.l.b16 %v613
    %v703 = vunpack.c.h.b16 %v613
    %v704 = vunpack.c.l.b16 %v614
    %v705 = vunpack.c.h.b16 %v614
    %v706 = vunpack.c.l.b16 %v615
    %v707 = vunpack.c.h.b16 %v615
    %v708 = vunpack.c.l.b16 %v616
    %v709 = vunpack.c.h.b16 %v616
    %v710 = vunpack.c.l.b16 %v617
    %v711 = vunpack.c.h.b16 %v617
    %v712 = vunpack.c.l.b16 %v618
    %v713 = vunpack.c.h.b16 %v618
    %v714 = vunpack.c.l.b16 %v619
    %v715 = vunpack.c.h.b16 %v619
    %v716 = vunpack.c.l.b16 %v620
    %v717 = vunpack.c.h.b16 %v620
    %v718 = vunpack.c.l.b16 %v621
    %v719 = vunpack.c.h.b16 %v621
    %v720 = vunpack.c.l.b16 %v622
    %v721 = vunpack.c.h.b16 %v622
    %v722 = vunpack.c.l.b16 %v623
    %v723 = vunpack.c.h.b16 %v623
    %v724 = vunpack.c.l.b16 %v624
    %v725 = vunpack.c.h.b16 %v624
    %v726 = vunpack.c.l.b16 %v625
    %v727 = vunpack.c.h.b16 %v625
    %v728 = vunpack.c.l.b16 %v626
    %v729 = vunpack.c.h.b16 %v626
    %v730 = vunpack.c.l.b16 %v627
    %v731 = vunpack.c.h.b16 %v627
    %v732 = vunpack.c.l.b16 %v628
    %v733 = vunpack.c.h.b16 %v628
    %v734 = vunpack.c.l.b16 %v629
    %v735 = vunpack.c.h.b16 %v629
    %v736 = vunpack.c.l.b16 %v630
    %v737 = vunpack.c.h.b16 %v630
    %v738 = vunpack.c.l.b16 %v631
    %v739 = vunpack.c.h.b16 %v631
    %v740 = vpack.c.b16 %v678, %v676
    %v741 = vpack.c.b16 %v679, %v677
    %v742 = vpack.c.b16 %v682, %v680
    %v743 = vpack.c.b16 %v683, %v681
    %v744 = vpack.c.b16 %v686, %v684
    %v745 = vpack.c.b16 %v687, %v685
    %v746 = vpack.c.b16 %v690, %v688
    %v747 = vpack.c.b16 %v691, %v689
    %v748 = vpack.c.b16 %v694, %v692
    %v749 = vpack.c.b16 %v695, %v693
    %v750 = vpack.c.b16 %v698, %v696
    %v751 = vpack.c.b16 %v699, %v697
    %v752 = vpack.c.b16 %v702, %v700
    %v753 = vpack.c.b16 %v703, %v701
    %v754 = vpack.c.b16 %v706, %v704
    %v755 = vpack.c.b16 %v707, %v705
    %v756 = vpack.c.b16 %v710, %v708
    %v757 = vpack.c.b16 %v711, %v709
    %v758 = vpack.c.b16 %v714, %v712
    %v759 = vpack.c.b16 %v715, %v713
    %v760 = vpack.c.b16 %v718, %v716
    %v761 = vpack.c.b16 %v719, %v717
    %v762 = vpack.c.b16 %v722, %v720
    %v763 = vpack.c.b16 %v723, %v721
    %v764 = vpack.c.b16 %v726, %v724
    %v765 = vpack.c.b16 %v727, %v725
    %v766 = vpack.c.b16 %v730, %v728
    %v767 = vpack.c.b16 %v731, %v729
    %v768 = vpack.c.b16 %v734, %v732
    %v769 = vpack.c.b16 %v735, %v733
    %v770 = vpack.c.b16 %v738, %v736
    %v771 = vpack.c.b16 %v739, %v737
    %804 = vmatprep.subr.bf16.mxu0 %v741
    %805 = vmatpush1.bf16.msra.mxu0 %v740
    %806 = vmatprep.subr.bf16.mxu0 %v743
    %807 = vmatpush1.bf16.msra.mxu0 %v742
    %808 = vmatprep.subr.bf16.mxu0 %v745
    %809 = vmatpush1.bf16.msra.mxu0 %v744
    %810 = vmatprep.subr.bf16.mxu0 %v747
    %811 = vmatpush1.bf16.msra.mxu0 %v746
    %812 = vmatprep.subr.bf16.mxu0 %v749
    %813 = vmatpush1.bf16.msra.mxu0 %v748
    %814 = vmatprep.subr.bf16.mxu0 %v751
    %815 = vmatpush1.bf16.msra.mxu0 %v750
    %816 = vmatprep.subr.bf16.mxu0 %v753
    %817 = vmatpush1.bf16.msra.mxu0 %v752
    %818 = vmatprep.subr.bf16.mxu0 %v755
    %819 = vmatpush1.bf16.msra.mxu0 %v754
    %820 = vmatprep.subr.bf16.mxu0 %v757
    %821 = vmatpush1.bf16.msra.mxu0 %v756
    %822 = vmatprep.subr.bf16.mxu0 %v759
    %823 = vmatpush1.bf16.msra.mxu0 %v758
    %824 = vmatprep.subr.bf16.mxu0 %v761
    %825 = vmatpush1.bf16.msra.mxu0 %v760
    %826 = vmatprep.subr.bf16.mxu0 %v763
    %827 = vmatpush1.bf16.msra.mxu0 %v762
    %828 = vmatprep.subr.bf16.mxu0 %v765
    %829 = vmatpush1.bf16.msra.mxu0 %v764
    %830 = vmatprep.subr.bf16.mxu0 %v767
    %831 = vmatpush1.bf16.msra.mxu0 %v766
    %832 = vmatprep.subr.bf16.mxu0 %v769
    %833 = vmatpush1.bf16.msra.mxu0 %v768
    %834 = vmatprep.subr.bf16.mxu0 %v771
    %835 = vmatpush1.bf16.msra.mxu0 %v770
    %836 = vmatprep.mubr.bf16.mxu0 %v599
    %837 = vmatmul.mubr.bf16.gmra.mrb[0].mxu0 %v598
    %v838 = vpop.f32.mrb[0].mxu0
    %v839 = vadd.f32 %v637, %v838
    %v840 = vpop.f32.mrb[0].mxu0
    %v841 = vadd.f32 %v641, %v840
    %v842 = vpop.f32.mrb[0].mxu0
    %v843 = vpop.f32.mrb[0].mxu0
    %844 = vdwg.mxu0
    %v845 = vxor.u32 %v839, 2147483648
    %v846 = vxor.u32 %v841, 2147483648
    %v847 = vmul.f32 %v845, 1.442695
    %v848 = vpow.pop %v847
    %v849 = vmul.f32 %v846, 1.442695
    %v850 = vpow.pop %v849
    %v851 = vadd.f32 %v848, 1.0
    %v852 = vadd.f32 %v850, 1.0
    %v853 = vrcp.pop %v851
    %v854 = vmul.f32 1.0, %v853
    %v855 = vrcp.pop %v852
    %v856 = vmul.f32 1.0, %v855
    %v857 = vpack.c.bf16 %v854, %v854
    %v858 = vpack.c.bf16 %v856, %v856
    %v859 = vld [vmem:[#allocation8] sm:$0xf]
    %v860 = vld [vmem:[#allocation8 + $0x4] sm:$0xf]
    %v861 = vld [vmem:[#allocation8 + $0x8] sm:$0xf]
    %v862 = vld [vmem:[#allocation8 + $0xc] sm:$0xf]
    %v863 = vld [vmem:[#allocation8 + $0x10] sm:$0xf]
    %v864 = vld [vmem:[#allocation8 + $0x14] sm:$0xf]
    %v865 = vld [vmem:[#allocation8 + $0x18] sm:$0xf]
    %v866 = vld [vmem:[#allocation8 + $0x1c] sm:$0xf]
    %v867 = vld [vmem:[#allocation8 + $0x20] sm:$0xf]
    %v868 = vld [vmem:[#allocation8 + $0x24] sm:$0xf]
    %v869 = vld [vmem:[#allocation8 + $0x28] sm:$0xf]
    %v870 = vld [vmem:[#allocation8 + $0x2c] sm:$0xf]
    %v871 = vld [vmem:[#allocation8 + $0x30] sm:$0xf]
    %v872 = vld [vmem:[#allocation8 + $0x34] sm:$0xf]
    %v873 = vld [vmem:[#allocation8 + $0x38] sm:$0xf]
    %v874 = vld [vmem:[#allocation8 + $0x3c] sm:$0xf]
    %v875 = vld [vmem:[#allocation8 + $0x40] sm:$0xf]
    %v876 = vld [vmem:[#allocation8 + $0x44] sm:$0xf]
    %v877 = vld [vmem:[#allocation8 + $0x48] sm:$0xf]
    %v878 = vld [vmem:[#allocation8 + $0x4c] sm:$0xf]
    %v879 = vld [vmem:[#allocation8 + $0x50] sm:$0xf]
    %v880 = vld [vmem:[#allocation8 + $0x54] sm:$0xf]
    %v881 = vld [vmem:[#allocation8 + $0x58] sm:$0xf]
    %v882 = vld [vmem:[#allocation8 + $0x5c] sm:$0xf]
    %v883 = vld [vmem:[#allocation8 + $0x60] sm:$0xf]
    %v884 = vld [vmem:[#allocation8 + $0x64] sm:$0xf]
    %v885 = vld [vmem:[#allocation8 + $0x68] sm:$0xf]
    %v886 = vld [vmem:[#allocation8 + $0x6c] sm:$0xf]
    %v887 = vld [vmem:[#allocation8 + $0x70] sm:$0xf]
    %v888 = vld [vmem:[#allocation8 + $0x74] sm:$0xf]
    %v889 = vld [vmem:[#allocation8 + $0x78] sm:$0xf]
    %v890 = vld [vmem:[#allocation8 + $0x7c] sm:$0xf]
    %v891 = vld [vmem:[%s6] sm:$0x1]
    %v893 = vlaneseq
    %v894 = vshrl.u32 %v893, 7
    %v895 = vsub.s32 0, %v894
    %v896 = vrot.slane %v891, %v895
    %v930 = vunpack.c.l.b16 %v859
    %v931 = vunpack.c.l.b16 %v860
    %v932 = vunpack.c.l.b16 %v861
    %v933 = vunpack.c.l.b16 %v862
    %v934 = vunpack.c.l.b16 %v863
    %v935 = vunpack.c.l.b16 %v864
    %v936 = vunpack.c.l.b16 %v865
    %v937 = vunpack.c.l.b16 %v866
    %v938 = vunpack.c.l.b16 %v867
    %v939 = vunpack.c.l.b16 %v868
    %v940 = vunpack.c.l.b16 %v869
    %v941 = vunpack.c.l.b16 %v870
    %v942 = vunpack.c.l.b16 %v871
    %v943 = vunpack.c.l.b16 %v872
    %v944 = vunpack.c.l.b16 %v873
    %v945 = vunpack.c.l.b16 %v874
    %v946 = vunpack.c.l.b16 %v875
    %v947 = vunpack.c.l.b16 %v876
    %v948 = vunpack.c.l.b16 %v877
    %v949 = vunpack.c.l.b16 %v878
    %v950 = vunpack.c.l.b16 %v879
    %v951 = vunpack.c.l.b16 %v880
    %v952 = vunpack.c.l.b16 %v881
    %v953 = vunpack.c.l.b16 %v882
    %v954 = vunpack.c.l.b16 %v883
    %v955 = vunpack.c.l.b16 %v884
    %v956 = vunpack.c.l.b16 %v885
    %v957 = vunpack.c.l.b16 %v886
    %v958 = vunpack.c.l.b16 %v887
    %v959 = vunpack.c.l.b16 %v888
    %v960 = vunpack.c.l.b16 %v889
    %v961 = vunpack.c.l.b16 %v890
    %v962 = vpack.c.b16 %v931, %v930
    %v963 = vpack.c.b16 %v933, %v932
    %v964 = vpack.c.b16 %v935, %v934
    %v965 = vpack.c.b16 %v937, %v936
    %v966 = vpack.c.b16 %v939, %v938
    %v967 = vpack.c.b16 %v941, %v940
    %v968 = vpack.c.b16 %v943, %v942
    %v969 = vpack.c.b16 %v945, %v944
    %v970 = vpack.c.b16 %v947, %v946
    %v971 = vpack.c.b16 %v949, %v948
    %v972 = vpack.c.b16 %v951, %v950
    %v973 = vpack.c.b16 %v953, %v952
    %v974 = vpack.c.b16 %v955, %v954
    %v975 = vpack.c.b16 %v957, %v956
    %v976 = vpack.c.b16 %v959, %v958
    %v977 = vpack.c.b16 %v961, %v960
    %994 = vmatprep.subr.bf16.mxu0 0
    %995 = vmatpush1.bf16.msra.mxu0 %v962
    %996 = vmatprep.subr.bf16.mxu0 0
    %997 = vmatpush1.bf16.msra.mxu0 %v963
    %998 = vmatprep.subr.bf16.mxu0 0
    %999 = vmatpush1.bf16.msra.mxu0 %v964
    %1000 = vmatprep.subr.bf16.mxu0 0
    %1001 = vmatpush1.bf16.msra.mxu0 %v965
    %1002 = vmatprep.subr.bf16.mxu0 0
    %1003 = vmatpush1.bf16.msra.mxu0 %v966
    %1004 = vmatprep.subr.bf16.mxu0 0
    %1005 = vmatpush1.bf16.msra.mxu0 %v967
    %1006 = vmatprep.subr.bf16.mxu0 0
    %1007 = vmatpush1.bf16.msra.mxu0 %v968
    %1008 = vmatprep.subr.bf16.mxu0 0
    %1009 = vmatpush1.bf16.msra.mxu0 %v969
    %1010 = vmatprep.subr.bf16.mxu0 0
    %1011 = vmatpush1.bf16.msra.mxu0 %v970
    %1012 = vmatprep.subr.bf16.mxu0 0
    %1013 = vmatpush1.bf16.msra.mxu0 %v971
    %1014 = vmatprep.subr.bf16.mxu0 0
    %1015 = vmatpush1.bf16.msra.mxu0 %v972
    %1016 = vmatprep.subr.bf16.mxu0 0
    %1017 = vmatpush1.bf16.msra.mxu0 %v973
    %1018 = vmatprep.subr.bf16.mxu0 0
    %1019 = vmatpush1.bf16.msra.mxu0 %v974
    %1020 = vmatprep.subr.bf16.mxu0 0
    %1021 = vmatpush1.bf16.msra.mxu0 %v975
    %1022 = vmatprep.subr.bf16.mxu0 0
    %1023 = vmatpush1.bf16.msra.mxu0 %v976
    %1024 = vmatprep.subr.bf16.mxu0 0
    %1025 = vmatpush1.bf16.msra.mxu0 %v977
    %1026 = vmatprep.mubr.bf16.mxu0 %v858
    %1027 = vmatmul.mubr.bf16.gmra.mrb[0].mxu0 %v857
    %v1028 = vpop.f32.mrb[0].mxu0
    %v1029 = vadd.f32 %v896, %v1028
    %v1030 = vpop.f32.mrb[0].mxu0
    %v1031 = vpop.f32.mrb[0].mxu0
    %v1032 = vpop.f32.mrb[0].mxu0
    %1033 = vdwg.mxu0
    %1034 = vst [vmem:[#allocation10] sm:$0x3] %v1029
    // Predicated region
    $region46: #{tpu_custom_call.1} parent=1 // pred_check
      _
    $region47: #{tpu_custom_call.1} parent=1 // pred_check_branch
      %1036 = sbr.rel (0) target = $region49
    $region48: #{tpu_custom_call.1} parent=1 // pred_region
      %s1038 = ssub.s32 32, 32
      %1039 = vsyncadd [#allocation4], %s1038
      %s1041 = sshll.u32 [#allocation10], 4
      %s1042 = int_to_ptr.vmem [resolvable:$true] %s1041
      %1044 = dma.vmem_to_hbm [thread:$0]  %s1042, 32, %s7, [#allocation4]
    $region49: #{tpu_custom_call.1} parent=1 // pred_fallthru
      _
    // Predicated region
    $region50: #{tpu_custom_call.1} parent=1 // pred_check
      _
    $region51: #{tpu_custom_call.1} parent=1 // pred_check_branch
      %1046 = sbr.rel (0) target = $region53
    $region52: #{tpu_custom_call.1} parent=1 // pred_region
      %1047 = dma.done [#allocation4], 32
    $region53: #{tpu_custom_call.1} parent=1 // pred_fallthru
      _
    %1048 = vsyncpa [#allocation3], 1
    %1049 = vsyncpa [#allocation6], 1
    %1050 = vsyncpa [#allocation9], 1
    %1051 = vsyncpa [#allocation4], 1

</llo_original>
